<compile_context>
chip_gen: v7x
topology: tpu7x:2x2x1
jax: 0.10.0
libtpu: 0.0.40
codegen_flags: <defaults>
</compile_context>

<pallas_src>
from functools import partial

import jax
import jax.numpy as jnp
from jax.experimental import pallas as pl
from jax.experimental.pallas import tpu as pltpu

_LANES = 128
_SUBLANES = 8
_TM_MAX = 2048                      # rows per batch tile (review: 2048-4096)


def _round_up(x, m):
    return ((x + m - 1) // m) * m


def _vmem_capacity_bytes():
    """Generation-aware VMEM capacity (falls back to the v7x per-TC 64 MiB)."""
    try:
        return int(pltpu.get_tpu_info().vmem_capacity_bytes)
    except Exception:
        return 64 * 1024 * 1024


def _tile_vmem_bytes(tm, dp, hp):
    """Conservative per-tile VMEM estimate (lane-padded widths)."""
    x_io = 2 * tm * dp * 4                               # double-buffered f32 X tile
    out_io = 2 * tm * hp * 4                             # double-buffered f32 out tile
    body = tm * (dp * 2 + 3 * hp * 4 + 2 * hp * 2)       # x bf16 + h1..h3 f32 + bf16 casts
    wts = 2 * (dp * hp * 2 + 2 * hp * hp * 2 + 3 * hp * 4)
    return x_io + out_io + body + wts


def _mlp_kernel(x_ref, w1_ref, b1_ref, w2_ref, b2_ref, w3_ref, b3_ref, o_ref):
    """Fused 3-layer MLP on a (TM, D) batch tile. bf16 MXU inputs, f32 accumulate."""
    x = x_ref[...].astype(jnp.bfloat16)                  # in-kernel cast (no HBM bf16 copy)
    h1 = jnp.maximum(
        jnp.dot(x, w1_ref[...], preferred_element_type=jnp.float32) + b1_ref[...], 0.0
    )
    h2 = jnp.maximum(
        jnp.dot(h1.astype(jnp.bfloat16), w2_ref[...],
                preferred_element_type=jnp.float32) + b2_ref[...], 0.0
    )
    h3 = jnp.maximum(
        jnp.dot(h2.astype(jnp.bfloat16), w3_ref[...],
                preferred_element_type=jnp.float32) + b3_ref[...], 0.0
    )
    # h3 is (TM, HP) lane-dense; store only the real H columns (H == full
    # out-array width, so this block shape is legal and halves output bytes).
    o_ref[...] = h3[:, : o_ref.shape[1]].astype(o_ref.dtype)


def prepare_traj_encoder_params(params):
    """One-time pad/cast of the weights (hoisted out of the forward pass)."""
    H = params["b1"].shape[0]
    D = params["w1"].shape[0]
    HP = _round_up(H, _LANES)

    def pad_w(w, rows, cols):
        w = w.astype(jnp.bfloat16)
        return jnp.pad(w, ((0, rows - w.shape[0]), (0, cols - w.shape[1])))

    def pad_b(b):
        b = b.astype(jnp.float32)
        return jnp.pad(b, (0, HP - b.shape[0])).reshape(1, HP)

    return {
        "w1": pad_w(params["w1"], D, HP),
        "w2": pad_w(params["w2"], HP, HP),
        "w3": pad_w(params["w3"], HP, HP),
        "b1": pad_b(params["b1"]),
        "b2": pad_b(params["b2"]),
        "b3": pad_b(params["b3"]),
        "hidden_dim": int(H),          # static python int (not traced)
    }


@partial(jax.jit, static_argnames=("hidden_dim",))
def _forward_impl(X, w1, b1, w2, b2, w3, b3, *, hidden_dim):
    B = X.shape[0]
    Xf = X.reshape(B, -1)                         # == X.view(X.shape[0], -1); stays f32
    D = Xf.shape[1]
    H = hidden_dim
    HP = w1.shape[1]                              # lane-dense hidden width (>= H)

    # Pad batch only to sublane granularity when needed (static check: no pad
    # op emitted for aligned B).  Ragged TM tails are masked by Pallas.
    Bp = _round_up(B, _SUBLANES)
    if Bp != B:
        Xf = jnp.pad(Xf, ((0, Bp - B), (0, 0)))

    # Batch tile sized against a generation-aware VMEM budget.
    cap = _vmem_capacity_bytes()
    tile_budget = int(0.70 * cap)
    vmem_limit = int(0.85 * cap)
    Dp = _round_up(D, _LANES)                     # lane-padded width for the estimate
    tm = min(_TM_MAX, Bp)
    while tm > _SUBLANES and _tile_vmem_bytes(tm, Dp, HP) > tile_budget:
        tm = max(_SUBLANES, _round_up(tm // 2, _SUBLANES))

    grid = (pl.cdiv(Bp, tm),)
    const = lambda i: (0, 0)

    out = pl.pallas_call(
        _mlp_kernel,
        out_shape=jax.ShapeDtypeStruct((Bp, H), jnp.float32),
        grid=grid,
        in_specs=[
            pl.BlockSpec((tm, D), lambda i: (i, 0)),   # X: tiled over batch
            pl.BlockSpec((D, HP), const),              # w1 (VMEM-resident)
            pl.BlockSpec((1, HP), const),              # b1
            pl.BlockSpec((HP, HP), const),             # w2
            pl.BlockSpec((1, HP), const),              # b2
            pl.BlockSpec((HP, HP), const),             # w3
            pl.BlockSpec((1, HP), const),              # b3
        ],
        out_specs=pl.BlockSpec((tm, H), lambda i: (i, 0)),   # unpadded H output
        compiler_params=pltpu.CompilerParams(
            dimension_semantics=("parallel",),
            vmem_limit_bytes=vmem_limit,
        ),
    )(Xf, w1, b1, w2, b2, w3, b3)

    return out[:B] if Bp != B else out


def traj_encoder_forward(X, prepared_params):
    """Forward pass of TrajEncoder: X -> relu(fc1) -> relu(fc2) -> relu(fc3)."""
    p = prepared_params
    return _forward_impl(X, p["w1"], p["b1"], p["w2"], p["b2"], p["w3"], p["b3"],
                         hidden_dim=p["hidden_dim"])


def init_traj_encoder_params(key, input_dim, hidden_dim=64):
    """Deterministic init mimicking nn.Linear's U(-1/sqrt(fan_in), 1/sqrt(fan_in))."""
    ks = jax.random.split(key, 6)

    def lin(kw, kb, fan_in, fan_out):
        bound = 1.0 / jnp.sqrt(jnp.float32(fan_in))
        w = jax.random.uniform(kw, (fan_in, fan_out), jnp.float32, -bound, bound)
        b = jax.random.uniform(kb, (fan_out,), jnp.float32, -bound, bound)
        return w, b

    w1, b1 = lin(ks[0], ks[1], input_dim, hidden_dim)
    w2, b2 = lin(ks[2], ks[3], hidden_dim, hidden_dim)
    w3, b3 = lin(ks[4], ks[5], hidden_dim, hidden_dim)
    return {"w1": w1, "b1": b1, "w2": w2, "b2": b2, "w3": w3, "b3": b3}


def _reference_forward(X, params):
    """Pure-JAX f32 reference matching the PyTorch module (nonlin after every fc)."""
    Xf = X.reshape(X.shape[0], -1).astype(jnp.float32)
    h = jnp.maximum(Xf @ params["w1"] + params["b1"], 0.0)
    h = jnp.maximum(h @ params["w2"] + params["b2"], 0.0)
    h = jnp.maximum(h @ params["w3"] + params["b3"], 0.0)
    return h


if __name__ == "__main__":
    key = jax.random.PRNGKey(0)
    k_x, k_p = jax.random.split(key)

    # Small shapes consistent with the module: batch=2, observation (4, 8)
    # -> input_dim=32, hidden_dim=64 (module default).
    B, F1, F2 = 2, 4, 8
    hidden_dim = 64
    input_dim = F1 * F2

    X = jax.random.normal(k_x, (B, F1, F2), dtype=jnp.float32)
    params = init_traj_encoder_params(k_p, input_dim, hidden_dim)
    prepared = prepare_traj_encoder_params(params)      # one-time pad/cast

    out = traj_encoder_forward(X, prepared)
    out = jax.block_until_ready(out)

    ref = _reference_forward(X, params)
    assert out.shape == (B, hidden_dim)
    # bf16 MXU inputs with f32 accumulation: loose-ish tolerance vs f32 reference.
    assert jnp.allclose(out, ref, atol=5e-2, rtol=5e-2), (
        float(jnp.max(jnp.abs(out - ref)))
    )

    print("KERNEL_OK")
</pallas_src>

<mosaic_0001>
module attributes {stable_mosaic.version = 11 : i64} {
  func.func @_mlp_kernel(%arg0: i32, %arg1: memref<8x32xf32, #tpu.memory_space<vmem>>, %arg2: memref<32x128xbf16, #tpu.memory_space<vmem>>, %arg3: memref<1x128xf32, #tpu.memory_space<vmem>>, %arg4: memref<128x128xbf16, #tpu.memory_space<vmem>>, %arg5: memref<1x128xf32, #tpu.memory_space<vmem>>, %arg6: memref<128x128xbf16, #tpu.memory_space<vmem>>, %arg7: memref<1x128xf32, #tpu.memory_space<vmem>>, %arg8: memref<8x64xf32, #tpu.memory_space<vmem>>) attributes {dimension_semantics = [#tpu.dimension_semantics<parallel>], iteration_bounds = array<i64: 1>, scalar_prefetch = 0 : i64, scratch_operands = 0 : i64, tpu.core_type = #tpu.core_type<tc>, window_params = [{transform_indices = @transform_0, window_bounds = array<i64: 8, 32>}, {pipeline_mode = #tpu.pipeline_mode<synchronous>, transform_indices = @transform_1, window_bounds = array<i64: 32, 128>}, {pipeline_mode = #tpu.pipeline_mode<synchronous>, transform_indices = @transform_2, window_bounds = array<i64: 1, 128>}, {pipeline_mode = #tpu.pipeline_mode<synchronous>, transform_indices = @transform_3, window_bounds = array<i64: 128, 128>}, {pipeline_mode = #tpu.pipeline_mode<synchronous>, transform_indices = @transform_4, window_bounds = array<i64: 1, 128>}, {pipeline_mode = #tpu.pipeline_mode<synchronous>, transform_indices = @transform_5, window_bounds = array<i64: 128, 128>}, {pipeline_mode = #tpu.pipeline_mode<synchronous>, transform_indices = @transform_6, window_bounds = array<i64: 1, 128>}, {transform_indices = @transform_7, window_bounds = array<i64: 8, 64>}]} {
    %c0 = arith.constant 0 : index
    %c0_0 = arith.constant 0 : index
    %0 = vector.load %arg1[%c0, %c0_0] : memref<8x32xf32, #tpu.memory_space<vmem>>, vector<8x32xf32>
    %1 = arith.truncf %0 : vector<8x32xf32> to vector<8x32xbf16>
    %c0_1 = arith.constant 0 : index
    %c0_2 = arith.constant 0 : index
    %2 = vector.load %arg2[%c0_1, %c0_2] : memref<32x128xbf16, #tpu.memory_space<vmem>>, vector<32x128xbf16>
    %cst = arith.constant dense<0.000000e+00> : vector<8x128xf32>
    %3 = tpu.matmul %1, %2, %cst {dimension_numbers = #tpu.dot_dimension_numbers<[1], [0], [0], [1], [0, 0, 1, 1], [], []>} : vector<8x32xbf16>, vector<32x128xbf16>, vector<8x128xf32> -> vector<8x128xf32>
    %c0_3 = arith.constant 0 : index
    %c0_4 = arith.constant 0 : index
    %4 = vector.load %arg3[%c0_3, %c0_4] : memref<1x128xf32, #tpu.memory_space<vmem>>, vector<1x128xf32>
    %5 = vector.broadcast %4 : vector<1x128xf32> to vector<8x128xf32>
    %6 = arith.addf %3, %5 : vector<8x128xf32>
    %cst_5 = arith.constant 0.000000e+00 : f32
    %7 = vector.broadcast %cst_5 : f32 to vector<8x128xf32>
    %8 = arith.maximumf %6, %7 : vector<8x128xf32>
    %9 = arith.truncf %8 : vector<8x128xf32> to vector<8x128xbf16>
    %c0_6 = arith.constant 0 : index
    %c0_7 = arith.constant 0 : index
    %10 = vector.load %arg4[%c0_6, %c0_7] : memref<128x128xbf16, #tpu.memory_space<vmem>>, vector<128x128xbf16>
    %cst_8 = arith.constant dense<0.000000e+00> : vector<8x128xf32>
    %11 = tpu.matmul %9, %10, %cst_8 {dimension_numbers = #tpu.dot_dimension_numbers<[1], [0], [0], [1], [0, 0, 1, 1], [], []>} : vector<8x128xbf16>, vector<128x128xbf16>, vector<8x128xf32> -> vector<8x128xf32>
    %c0_9 = arith.constant 0 : index
    %c0_10 = arith.constant 0 : index
    %12 = vector.load %arg5[%c0_9, %c0_10] : memref<1x128xf32, #tpu.memory_space<vmem>>, vector<1x128xf32>
    %13 = vector.broadcast %12 : vector<1x128xf32> to vector<8x128xf32>
    %14 = arith.addf %11, %13 : vector<8x128xf32>
    %cst_11 = arith.constant 0.000000e+00 : f32
    %15 = vector.broadcast %cst_11 : f32 to vector<8x128xf32>
    %16 = arith.maximumf %14, %15 : vector<8x128xf32>
    %17 = arith.truncf %16 : vector<8x128xf32> to vector<8x128xbf16>
    %c0_12 = arith.constant 0 : index
    %c0_13 = arith.constant 0 : index
    %18 = vector.load %arg6[%c0_12, %c0_13] : memref<128x128xbf16, #tpu.memory_space<vmem>>, vector<128x128xbf16>
    %cst_14 = arith.constant dense<0.000000e+00> : vector<8x128xf32>
    %19 = tpu.matmul %17, %18, %cst_14 {dimension_numbers = #tpu.dot_dimension_numbers<[1], [0], [0], [1], [0, 0, 1, 1], [], []>} : vector<8x128xbf16>, vector<128x128xbf16>, vector<8x128xf32> -> vector<8x128xf32>
    %c0_15 = arith.constant 0 : index
    %c0_16 = arith.constant 0 : index
    %20 = vector.load %arg7[%c0_15, %c0_16] : memref<1x128xf32, #tpu.memory_space<vmem>>, vector<1x128xf32>
    %21 = vector.broadcast %20 : vector<1x128xf32> to vector<8x128xf32>
    %22 = arith.addf %19, %21 : vector<8x128xf32>
    %cst_17 = arith.constant 0.000000e+00 : f32
    %23 = vector.broadcast %cst_17 : f32 to vector<8x128xf32>
    %24 = arith.maximumf %22, %23 : vector<8x128xf32>
    %25 = vector.extract_strided_slice %24 {offsets = [0, 0], sizes = [8, 64], strides = [1, 1]} : vector<8x128xf32> to vector<8x64xf32>
    %c0_18 = arith.constant 0 : index
    %c0_19 = arith.constant 0 : index
    %26 = vector.load %arg8[%c0_18, %c0_19] : memref<8x64xf32, #tpu.memory_space<vmem>>, vector<8x64xf32>
    tpu.vector_store %arg8[%c0_18, %c0_19], %25 {strides = array<i32>} : memref<8x64xf32, #tpu.memory_space<vmem>>, vector<8x64xf32>,
    return
  }
  func.func @transform_0(%arg0: i32) -> (i32, i32) {
    %c0_i32 = arith.constant 0 : i32
    %c0_i32_0 = arith.constant 0 : i32
    return %arg0, %c0_i32 : i32, i32
  }
  func.func @transform_1(%arg0: i32) -> (i32, i32) {
    %c0_i32 = arith.constant 0 : i32
    %c0_i32_0 = arith.constant 0 : i32
    %c0_i32_1 = arith.constant 0 : i32
    return %c0_i32, %c0_i32_0 : i32, i32
  }
  func.func @transform_2(%arg0: i32) -> (i32, i32) {
    %c0_i32 = arith.constant 0 : i32
    %c0_i32_0 = arith.constant 0 : i32
    %c0_i32_1 = arith.constant 0 : i32
    return %c0_i32, %c0_i32_0 : i32, i32
  }
  func.func @transform_3(%arg0: i32) -> (i32, i32) {
    %c0_i32 = arith.constant 0 : i32
    %c0_i32_0 = arith.constant 0 : i32
    %c0_i32_1 = arith.constant 0 : i32
    return %c0_i32, %c0_i32_0 : i32, i32
  }
  func.func @transform_4(%arg0: i32) -> (i32, i32) {
    %c0_i32 = arith.constant 0 : i32
    %c0_i32_0 = arith.constant 0 : i32
    %c0_i32_1 = arith.constant 0 : i32
    return %c0_i32, %c0_i32_0 : i32, i32
  }
  func.func @transform_5(%arg0: i32) -> (i32, i32) {
    %c0_i32 = arith.constant 0 : i32
    %c0_i32_0 = arith.constant 0 : i32
    %c0_i32_1 = arith.constant 0 : i32
    return %c0_i32, %c0_i32_0 : i32, i32
  }
  func.func @transform_6(%arg0: i32) -> (i32, i32) {
    %c0_i32 = arith.constant 0 : i32
    %c0_i32_0 = arith.constant 0 : i32
    %c0_i32_1 = arith.constant 0 : i32
    return %c0_i32, %c0_i32_0 : i32, i32
  }
  func.func @transform_7(%arg0: i32) -> (i32, i32) {
    %c0_i32 = arith.constant 0 : i32
    %c0_i32_0 = arith.constant 0 : i32
    return %arg0, %c0_i32 : i32, i32
  }
}

</mosaic_0001>

<llo_original>
// kernel: _forward_impl.1
$region0: #{_forward_impl.1}
  #allocation0 [shape = 'u32[]', space=smem, size = 0x4, offset = 0x4, fixed_abs, tag = 'smem constant byte address 0x4 - core index']
  #allocation1 [shape = 'u32[144,128]{1,0:T(1,128)}', space=vmem, size = 0x12000, scoped, tag = 'internal scratch']
  %s0 = inlined_call_operand.vmem [shape: f32[8,32], index: 0, kind: input, shape index: {}]
  %s1 = inlined_call_operand.vmem [shape: bf16[32,128], index: 1, kind: input, shape index: {}]
  %s2 = inlined_call_operand.vmem [shape: f32[1,128], index: 2, kind: input, shape index: {}]
  %s3 = inlined_call_operand.hbm [shape: bf16[128,128], index: 3, kind: input, shape index: {}]
  %s4 = inlined_call_operand.vmem [shape: f32[1,128], index: 4, kind: input, shape index: {}]
  %s5 = inlined_call_operand.hbm [shape: bf16[128,128], index: 5, kind: input, shape index: {}]
  %s6 = inlined_call_operand.vmem [shape: f32[1,128], index: 6, kind: input, shape index: {}]
  %s7 = inlined_call_operand.vmem [shape: f32[8,64], index: 7, kind: output, shape index: {}]
  %s8 = sld [smem:[#allocation0]]
  $region46: #{_forward_impl.1} parent=0
    _
  %s10 = ssub.s32 1, %s8
  %s11 = scalar_select 0, %s10, %s8
  $region1: #{_forward_impl.1} parent=0
    #allocation2 [shape = 'u8[32768]{0}', space=vmem, size = 0x8000, scoped, tag = 'input window, operand 3, single buffered']
    #allocation3 [shape = 's32[1]{0}', space=sflag, size = 0x4, scoped, tag = 'scoped memory for _forward_impl.1']
    #allocation4 [shape = 'u8[32768]{0}', space=vmem, size = 0x8000, scoped, tag = 'input window, operand 5, single buffered']
    #allocation5 [shape = 's32[1]{0}', space=sflag, size = 0x4, scoped, tag = 'scoped memory for _forward_impl.1']
    %12 = vsyncpa [#allocation3], 0
    %13 = vsyncpa [#allocation5], 0
    // Predicated region
    $region2: #{_forward_impl.1} parent=1 // pred_check
      _
    $region3: #{_forward_impl.1} parent=1 // pred_check_branch
      %15 = sbr.rel (0) target = $region5
    $region4: #{_forward_impl.1} parent=1 // pred_region
      _
    $region5: #{_forward_impl.1} parent=1 // pred_fallthru
      _
    // Predicated region
    $region6: #{_forward_impl.1} parent=1 // pred_check
      _
    $region7: #{_forward_impl.1} parent=1 // pred_check_branch
      %17 = sbr.rel (0) target = $region9
    $region8: #{_forward_impl.1} parent=1 // pred_region
      _
    $region9: #{_forward_impl.1} parent=1 // pred_fallthru
      _
    // Predicated region
    $region10: #{_forward_impl.1} parent=1 // pred_check
      _
    $region11: #{_forward_impl.1} parent=1 // pred_check_branch
      %19 = sbr.rel (0) target = $region13
    $region12: #{_forward_impl.1} parent=1 // pred_region
      _
    $region13: #{_forward_impl.1} parent=1 // pred_fallthru
      _
    // Predicated region
    $region14: #{_forward_impl.1} parent=1 // pred_check
      _
    $region15: #{_forward_impl.1} parent=1 // pred_check_branch
      %21 = sbr.rel (0) target = $region17
    $region16: #{_forward_impl.1} parent=1 // pred_region
      %s23 = ssub.s32 1024, 1024
      %24 = vsyncadd [#allocation3], %s23
      %s25 = sshll.u32 [#allocation2], 4
      %s26 = int_to_ptr.vmem [resolvable:$true] %s25
      %31 = dma.hbm_to_vmem [thread:$0]  %s3, 1024, %s26, [#allocation3], 64, 64, 4
    $region17: #{_forward_impl.1} parent=1 // pred_fallthru
      _
    // Predicated region
    $region18: #{_forward_impl.1} parent=1 // pred_check
      _
    $region19: #{_forward_impl.1} parent=1 // pred_check_branch
      %33 = sbr.rel (0) target = $region21
    $region20: #{_forward_impl.1} parent=1 // pred_region
      _
    $region21: #{_forward_impl.1} parent=1 // pred_fallthru
      _
    // Predicated region
    $region22: #{_forward_impl.1} parent=1 // pred_check
      _
    $region23: #{_forward_impl.1} parent=1 // pred_check_branch
      %35 = sbr.rel (0) target = $region25
    $region24: #{_forward_impl.1} parent=1 // pred_region
      %s37 = ssub.s32 1024, 1024
      %38 = vsyncadd [#allocation5], %s37
      %s39 = sshll.u32 [#allocation4], 4
      %s40 = int_to_ptr.vmem [resolvable:$true] %s39
      %45 = dma.hbm_to_vmem [thread:$0]  %s5, 1024, %s40, [#allocation5], 64, 64, 4
    $region25: #{_forward_impl.1} parent=1 // pred_fallthru
      _
    // Predicated region
    $region26: #{_forward_impl.1} parent=1 // pred_check
      _
    $region27: #{_forward_impl.1} parent=1 // pred_check_branch
      %47 = sbr.rel (0) target = $region29
    $region28: #{_forward_impl.1} parent=1 // pred_region
      _
    $region29: #{_forward_impl.1} parent=1 // pred_fallthru
      _
    // Predicated region
    $region30: #{_forward_impl.1} parent=1 // pred_check
      _
    $region31: #{_forward_impl.1} parent=1 // pred_check_branch
      %49 = sbr.rel (0) target = $region33
    $region32: #{_forward_impl.1} parent=1 // pred_region
      %50 = dma.done [#allocation3], 1024
    $region33: #{_forward_impl.1} parent=1 // pred_fallthru
      _
    // Predicated region
    $region34: #{_forward_impl.1} parent=1 // pred_check
      _
    $region35: #{_forward_impl.1} parent=1 // pred_check_branch
      %52 = sbr.rel (0) target = $region37
    $region36: #{_forward_impl.1} parent=1 // pred_region
      %53 = dma.done [#allocation5], 1024
    $region37: #{_forward_impl.1} parent=1 // pred_fallthru
      _
    %v55 = vld [vmem:[%s0] sm:$0xff]
    %v56 = vpack.c.bf16 %v55, %v55
    %v57 = vld [vmem:[%s1] sm:$0xf]
    %v58 = vld [vmem:[%s1 + $0x4] sm:$0xf]
    %v59 = vld [vmem:[%s1 + $0x8] sm:$0xf]
    %v60 = vld [vmem:[%s1 + $0xc] sm:$0xf]
    %v61 = vld [vmem:[%s2] sm:$0x1]
    %v63 = vlaneseq
    %v64 = vshrl.u32 %v63, 7
    %v65 = vsub.s32 0, %v64
    %v66 = vrot.slane %v61, %v65
    %v72 = vunpack.c.l.b16 %v57
    %v73 = vunpack.c.l.b16 %v58
    %v74 = vunpack.c.l.b16 %v59
    %v75 = vunpack.c.l.b16 %v60
    %v76 = vpack.c.b16 %v73, %v72
    %v77 = vpack.c.b16 %v75, %v74
    %vm80 = vcmask 261120
    %v82 = vsel %vm80, %v56, 0
    %84 = vmatprep.subr.bf16.mxu0 0
    %85 = vmatpush1.bf16.msra.mxu0 %v76
    %86 = vmatprep.subr.bf16.mxu0 0
    %87 = vmatpush1.bf16.msra.mxu0 %v77
    %88 = vmatprep.subr.bf16.mxu0 0
    %89 = vmatpush1.bf16.msra.mxu0 0
    %90 = vmatprep.subr.bf16.mxu0 0
    %91 = vmatpush1.bf16.msra.mxu0 0
    %92 = vmatprep.subr.bf16.mxu0 0
    %93 = vmatpush1.bf16.msra.mxu0 0
    %94 = vmatprep.subr.bf16.mxu0 0
    %95 = vmatpush1.bf16.msra.mxu0 0
    %96 = vmatprep.subr.bf16.mxu0 0
    %97 = vmatpush1.bf16.msra.mxu0 0
    %98 = vmatprep.subr.bf16.mxu0 0
    %99 = vmatpush1.bf16.msra.mxu0 0
    %100 = vmatprep.subr.bf16.mxu0 0
    %101 = vmatpush1.bf16.msra.mxu0 0
    %102 = vmatprep.subr.bf16.mxu0 0
    %103 = vmatpush1.bf16.msra.mxu0 0
    %104 = vmatprep.subr.bf16.mxu0 0
    %105 = vmatpush1.bf16.msra.mxu0 0
    %106 = vmatprep.subr.bf16.mxu0 0
    %107 = vmatpush1.bf16.msra.mxu0 0
    %108 = vmatprep.subr.bf16.mxu0 0
    %109 = vmatpush1.bf16.msra.mxu0 0
    %110 = vmatprep.subr.bf16.mxu0 0
    %111 = vmatpush1.bf16.msra.mxu0 0
    %112 = vmatprep.subr.bf16.mxu0 0
    %113 = vmatpush1.bf16.msra.mxu0 0
    %114 = vmatprep.subr.bf16.mxu0 0
    %115 = vmatpush1.bf16.msra.mxu0 0
    %116 = vmatprep.mubr.bf16.mxu0 0
    %117 = vmatmul.mubr.bf16.gmra.mrb[0].mxu0 %v82
    %v118 = vpop.f32.mrb[0].mxu0
    %v119 = vadd.f32 %v66, %v118
    %v120 = vpop.f32.mrb[0].mxu0
    %v121 = vpop.f32.mrb[0].mxu0
    %v122 = vpop.f32.mrb[0].mxu0
    %123 = vdwg.mxu0
    %v124 = vmax.f32 %v119, 0.0
    %v125 = vpack.c.bf16 %v124, %v124
    %v126 = vld [vmem:[#allocation2] sm:$0xf]
    %v127 = vld [vmem:[#allocation2 + $0x4] sm:$0xf]
    %v128 = vld [vmem:[#allocation2 + $0x8] sm:$0xf]
    %v129 = vld [vmem:[#allocation2 + $0xc] sm:$0xf]
    %v130 = vld [vmem:[#allocation2 + $0x10] sm:$0xf]
    %v131 = vld [vmem:[#allocation2 + $0x14] sm:$0xf]
    %v132 = vld [vmem:[#allocation2 + $0x18] sm:$0xf]
    %v133 = vld [vmem:[#allocation2 + $0x1c] sm:$0xf]
    %v134 = vld [vmem:[#allocation2 + $0x20] sm:$0xf]
    %v135 = vld [vmem:[#allocation2 + $0x24] sm:$0xf]
    %v136 = vld [vmem:[#allocation2 + $0x28] sm:$0xf]
    %v137 = vld [vmem:[#allocation2 + $0x2c] sm:$0xf]
    %v138 = vld [vmem:[#allocation2 + $0x30] sm:$0xf]
    %v139 = vld [vmem:[#allocation2 + $0x34] sm:$0xf]
    %v140 = vld [vmem:[#allocation2 + $0x38] sm:$0xf]
    %v141 = vld [vmem:[#allocation2 + $0x3c] sm:$0xf]
    %v142 = vld [vmem:[%s4] sm:$0x1]
    %v144 = vlaneseq
    %v145 = vshrl.u32 %v144, 7
    %v146 = vsub.s32 0, %v145
    %v147 = vrot.slane %v142, %v146
    %v165 = vunpack.c.l.b16 %v126
    %v166 = vunpack.c.l.b16 %v127
    %v167 = vunpack.c.l.b16 %v128
    %v168 = vunpack.c.l.b16 %v129
    %v169 = vunpack.c.l.b16 %v130
    %v170 = vunpack.c.l.b16 %v131
    %v171 = vunpack.c.l.b16 %v132
    %v172 = vunpack.c.l.b16 %v133
    %v173 = vunpack.c.l.b16 %v134
    %v174 = vunpack.c.l.b16 %v135
    %v175 = vunpack.c.l.b16 %v136
    %v176 = vunpack.c.l.b16 %v137
    %v177 = vunpack.c.l.b16 %v138
    %v178 = vunpack.c.l.b16 %v139
    %v179 = vunpack.c.l.b16 %v140
    %v180 = vunpack.c.l.b16 %v141
    %v181 = vpack.c.b16 %v166, %v165
    %v182 = vpack.c.b16 %v168, %v167
    %v183 = vpack.c.b16 %v170, %v169
    %v184 = vpack.c.b16 %v172, %v171
    %v185 = vpack.c.b16 %v174, %v173
    %v186 = vpack.c.b16 %v176, %v175
    %v187 = vpack.c.b16 %v178, %v177
    %v188 = vpack.c.b16 %v180, %v179
    %197 = vmatprep.subr.bf16.mxu0 0
    %198 = vmatpush1.bf16.msra.mxu0 %v181
    %199 = vmatprep.subr.bf16.mxu0 0
    %200 = vmatpush1.bf16.msra.mxu0 %v182
    %201 = vmatprep.subr.bf16.mxu0 0
    %202 = vmatpush1.bf16.msra.mxu0 %v183
    %203 = vmatprep.subr.bf16.mxu0 0
    %204 = vmatpush1.bf16.msra.mxu0 %v184
    %205 = vmatprep.subr.bf16.mxu0 0
    %206 = vmatpush1.bf16.msra.mxu0 %v185
    %207 = vmatprep.subr.bf16.mxu0 0
    %208 = vmatpush1.bf16.msra.mxu0 %v186
    %209 = vmatprep.subr.bf16.mxu0 0
    %210 = vmatpush1.bf16.msra.mxu0 %v187
    %211 = vmatprep.subr.bf16.mxu0 0
    %212 = vmatpush1.bf16.msra.mxu0 %v188
    %213 = vmatprep.subr.bf16.mxu0 0
    %214 = vmatpush1.bf16.msra.mxu0 0
    %215 = vmatprep.subr.bf16.mxu0 0
    %216 = vmatpush1.bf16.msra.mxu0 0
    %217 = vmatprep.subr.bf16.mxu0 0
    %218 = vmatpush1.bf16.msra.mxu0 0
    %219 = vmatprep.subr.bf16.mxu0 0
    %220 = vmatpush1.bf16.msra.mxu0 0
    %221 = vmatprep.subr.bf16.mxu0 0
    %222 = vmatpush1.bf16.msra.mxu0 0
    %223 = vmatprep.subr.bf16.mxu0 0
    %224 = vmatpush1.bf16.msra.mxu0 0
    %225 = vmatprep.subr.bf16.mxu0 0
    %226 = vmatpush1.bf16.msra.mxu0 0
    %227 = vmatprep.subr.bf16.mxu0 0
    %228 = vmatpush1.bf16.msra.mxu0 0
    %229 = vmatprep.mubr.bf16.mxu0 0
    %230 = vmatmul.mubr.bf16.gmra.mrb[0].mxu0 %v125
    %v231 = vpop.f32.mrb[0].mxu0
    %v232 = vadd.f32 %v147, %v231
    %v233 = vpop.f32.mrb[0].mxu0
    %v234 = vpop.f32.mrb[0].mxu0
    %v235 = vpop.f32.mrb[0].mxu0
    %236 = vdwg.mxu0
    %v237 = vmax.f32 %v232, 0.0
    %v238 = vpack.c.bf16 %v237, %v237
    %v239 = vld [vmem:[#allocation4] sm:$0xf]
    %v240 = vld [vmem:[#allocation4 + $0x4] sm:$0xf]
    %v241 = vld [vmem:[#allocation4 + $0x8] sm:$0xf]
    %v242 = vld [vmem:[#allocation4 + $0xc] sm:$0xf]
    %v243 = vld [vmem:[#allocation4 + $0x10] sm:$0xf]
    %v244 = vld [vmem:[#allocation4 + $0x14] sm:$0xf]
    %v245 = vld [vmem:[#allocation4 + $0x18] sm:$0xf]
    %v246 = vld [vmem:[#allocation4 + $0x1c] sm:$0xf]
    %v247 = vld [vmem:[#allocation4 + $0x20] sm:$0xf]
    %v248 = vld [vmem:[#allocation4 + $0x24] sm:$0xf]
    %v249 = vld [vmem:[#allocation4 + $0x28] sm:$0xf]
    %v250 = vld [vmem:[#allocation4 + $0x2c] sm:$0xf]
    %v251 = vld [vmem:[#allocation4 + $0x30] sm:$0xf]
    %v252 = vld [vmem:[#allocation4 + $0x34] sm:$0xf]
    %v253 = vld [vmem:[#allocation4 + $0x38] sm:$0xf]
    %v254 = vld [vmem:[#allocation4 + $0x3c] sm:$0xf]
    %v255 = vld [vmem:[%s6] sm:$0x1]
    %v257 = vlaneseq
    %v258 = vshrl.u32 %v257, 7
    %v259 = vsub.s32 0, %v258
    %v260 = vrot.slane %v255, %v259
    %v278 = vunpack.c.l.b16 %v239
    %v279 = vunpack.c.l.b16 %v240
    %v280 = vunpack.c.l.b16 %v241
    %v281 = vunpack.c.l.b16 %v242
    %v282 = vunpack.c.l.b16 %v243
    %v283 = vunpack.c.l.b16 %v244
    %v284 = vunpack.c.l.b16 %v245
    %v285 = vunpack.c.l.b16 %v246
    %v286 = vunpack.c.l.b16 %v247
    %v287 = vunpack.c.l.b16 %v248
    %v288 = vunpack.c.l.b16 %v249
    %v289 = vunpack.c.l.b16 %v250
    %v290 = vunpack.c.l.b16 %v251
    %v291 = vunpack.c.l.b16 %v252
    %v292 = vunpack.c.l.b16 %v253
    %v293 = vunpack.c.l.b16 %v254
    %v294 = vpack.c.b16 %v279, %v278
    %v295 = vpack.c.b16 %v281, %v280
    %v296 = vpack.c.b16 %v283, %v282
    %v297 = vpack.c.b16 %v285, %v284
    %v298 = vpack.c.b16 %v287, %v286
    %v299 = vpack.c.b16 %v289, %v288
    %v300 = vpack.c.b16 %v291, %v290
    %v301 = vpack.c.b16 %v293, %v292
    %310 = vmatprep.subr.bf16.mxu0 0
    %311 = vmatpush1.bf16.msra.mxu0 %v294
    %312 = vmatprep.subr.bf16.mxu0 0
    %313 = vmatpush1.bf16.msra.mxu0 %v295
    %314 = vmatprep.subr.bf16.mxu0 0
    %315 = vmatpush1.bf16.msra.mxu0 %v296
    %316 = vmatprep.subr.bf16.mxu0 0
    %317 = vmatpush1.bf16.msra.mxu0 %v297
    %318 = vmatprep.subr.bf16.mxu0 0
    %319 = vmatpush1.bf16.msra.mxu0 %v298
    %320 = vmatprep.subr.bf16.mxu0 0
    %321 = vmatpush1.bf16.msra.mxu0 %v299
    %322 = vmatprep.subr.bf16.mxu0 0
    %323 = vmatpush1.bf16.msra.mxu0 %v300
    %324 = vmatprep.subr.bf16.mxu0 0
    %325 = vmatpush1.bf16.msra.mxu0 %v301
    %326 = vmatprep.subr.bf16.mxu0 0
    %327 = vmatpush1.bf16.msra.mxu0 0
    %328 = vmatprep.subr.bf16.mxu0 0
    %329 = vmatpush1.bf16.msra.mxu0 0
    %330 = vmatprep.subr.bf16.mxu0 0
    %331 = vmatpush1.bf16.msra.mxu0 0
    %332 = vmatprep.subr.bf16.mxu0 0
    %333 = vmatpush1.bf16.msra.mxu0 0
    %334 = vmatprep.subr.bf16.mxu0 0
    %335 = vmatpush1.bf16.msra.mxu0 0
    %336 = vmatprep.subr.bf16.mxu0 0
    %337 = vmatpush1.bf16.msra.mxu0 0
    %338 = vmatprep.subr.bf16.mxu0 0
    %339 = vmatpush1.bf16.msra.mxu0 0
    %340 = vmatprep.subr.bf16.mxu0 0
    %341 = vmatpush1.bf16.msra.mxu0 0
    %342 = vmatprep.mubr.bf16.mxu0 0
    %343 = vmatmul.mubr.bf16.gmra.mrb[0].mxu0 %v238
    %v344 = vpop.f32.mrb[0].mxu0
    %v345 = vadd.f32 %v260, %v344
    %v346 = vpop.f32.mrb[0].mxu0
    %v347 = vpop.f32.mrb[0].mxu0
    %v348 = vpop.f32.mrb[0].mxu0
    %349 = vdwg.mxu0
    %v350 = vmax.f32 %v345, 0.0
    %vm351 = vcmask 523264
    %352 = vst.msk [vmem:[%s7] sm:$0xff] %vm351, %v350
    // Predicated region
    $region38: #{_forward_impl.1} parent=1 // pred_check
      _
    $region39: #{_forward_impl.1} parent=1 // pred_check_branch
      %354 = sbr.rel (0) target = $region41
    $region40: #{_forward_impl.1} parent=1 // pred_region
      _
    $region41: #{_forward_impl.1} parent=1 // pred_fallthru
      _
    // Predicated region
    $region42: #{_forward_impl.1} parent=1 // pred_check
      _
    $region43: #{_forward_impl.1} parent=1 // pred_check_branch
      %356 = sbr.rel (0) target = $region45
    $region44: #{_forward_impl.1} parent=1 // pred_region
      _
    $region45: #{_forward_impl.1} parent=1 // pred_fallthru
      _
    %357 = vsyncpa [#allocation3], 1
    %358 = vsyncpa [#allocation5], 1

</llo_original>
